<compile_context>
chip_gen: v7x
topology: tpu7x:2x2x1
jax: 0.10.0
libtpu: 0.0.40
codegen_flags: <defaults>
</compile_context>

<pallas_src>
import math

import jax
import jax.numpy as jnp
from jax.experimental import pallas as pl
from jax.experimental.pallas import tpu as pltpu


def _round_up(x, m):
    return -(-x // m) * m


def _linear_kernel(x_ref, w_ref, b_ref, o_ref):
    # x_ref: (TM, D)  w_ref: (D, N)  b_ref: (1, N)  o_ref: (TM, N)
    acc = jnp.dot(x_ref[...], w_ref[...], preferred_element_type=jnp.float32)
    o_ref[...] = (acc + b_ref[...].astype(jnp.float32)).astype(o_ref.dtype)


def linear_pallas(x, weight_t, bias, *, tm=2048, compute_dtype=None,
                  small_m_threshold=1024):
    """y = x @ weight_t + bias, applied over the last dim of x.

    x:        (..., D)
    weight_t: (D, N)   -- pre-transposed (PyTorch nn.Linear stores (N, D);
                          transpose once at parameter-setup time, not per call)
    bias:     (N,)
    compute_dtype: optional narrower dtype (e.g. jnp.bfloat16) for x/weight
                   HBM traffic; accumulation stays f32, output stays x.dtype.
    """
    *lead, D = x.shape
    Dw, N = weight_t.shape
    assert Dw == D, f"weight_t first dim {Dw} must match x last dim {D}"

    out_dtype = x.dtype

    M = 1
    for s in lead:
        M *= s
    x2 = x.reshape(M, D)

    # --- small-M fast path: nothing to pipeline, let XLA fuse it -------------
    if M < small_m_threshold:
        y = (x2 @ weight_t + bias).astype(out_dtype)
        return y.reshape(*lead, N)

    if compute_dtype is not None:
        x2 = x2.astype(compute_dtype)
        weight_t = weight_t.astype(compute_dtype)

    itemsize = jnp.dtype(x2.dtype).itemsize
    out_itemsize = jnp.dtype(out_dtype).itemsize

    # --- tile sizing ----------------------------------------------------------
    SUB = 8
    m_aligned = _round_up(max(M, SUB), SUB)
    # cap tile at ceil(M/2) so grid_m >= 2 (feeds both TensorCores on v7x),
    # otherwise as big as `tm` allows (amortizes per-step overhead).
    half = _round_up(-(-m_aligned // 2), SUB)
    tile_m = max(SUB, min(tm, half))
    grid_m = pl.cdiv(M, tile_m)          # ragged last block handled by Pallas

    b2 = bias.reshape(1, N)

    # --- VMEM budget: VMEM tiles are lane/sublane padded, double-buffered -----
    lane_d = _round_up(D, 128)
    lane_n = _round_up(N, 128)
    vmem_bytes = (2 * tile_m * lane_d * itemsize            # x tiles (D padded to 128 lanes)
                  + 2 * tile_m * lane_n * out_itemsize      # out tiles
                  + 2 * _round_up(D, SUB) * lane_n * itemsize   # resident weight
                  + 2 * SUB * lane_n * 4                    # bias
                  + (2 << 20))                              # compiler scratch headroom
    vmem_bytes = min(max(vmem_bytes, 4 << 20), 48 << 20)    # stay well under v7x 64 MiB

    cost = pl.CostEstimate(
        flops=2 * M * D * N,
        transcendentals=0,
        bytes_accessed=itemsize * (M * D + D * N) + 4 * N + out_itemsize * M * N,
    )

    # NOTE: out_specs pipeline_mode=pl.Buffered(3) is a possible few-% win for
    # hiding the (8x larger than input) writeback DMA; sweep if needed.
    out = pl.pallas_call(
        _linear_kernel,
        out_shape=jax.ShapeDtypeStruct((M, N), out_dtype),
        grid_spec=pltpu.PrefetchScalarGridSpec(
            num_scalar_prefetch=0,
            grid=(grid_m,),
            in_specs=[
                pl.BlockSpec((tile_m, D), lambda i: (i, 0)),   # x tile marches down M
                pl.BlockSpec((D, N), lambda i: (0, 0)),        # weight stays resident
                pl.BlockSpec((1, N), lambda i: (0, 0)),        # bias stays resident
            ],
            out_specs=pl.BlockSpec((tile_m, N), lambda i: (i, 0)),
        ),
        compiler_params=pltpu.CompilerParams(
            dimension_semantics=("parallel",),     # independent M tiles -> 2 TCs on v7x
            vmem_limit_bytes=int(vmem_bytes),
        ),
        cost_estimate=cost,
    )(x2, weight_t, b2)

    return out.reshape(*lead, N)


def init_fc_params(key, in_features, out_features, dtype=jnp.float32):
    # Deterministic init mirroring nn.Linear default: U(-1/sqrt(fan_in), 1/sqrt(fan_in))
    kw, kb = jax.random.split(key)
    bound = 1.0 / math.sqrt(in_features)
    weight = jax.random.uniform(kw, (out_features, in_features), dtype,
                                minval=-bound, maxval=bound)   # PyTorch (N, D) layout
    bias = jax.random.uniform(kb, (out_features,), dtype,
                              minval=-bound, maxval=bound)
    return weight, bias


if __name__ == "__main__":
    key = jax.random.PRNGKey(0)
    k_x, k_p = jax.random.split(key)

    B, S, D = 2, 8, 32          # x.shape[2] == D == 32 -> fc: Linear(32, 256)
    OUT = 256

    x = jax.random.normal(k_x, (B, S, D), dtype=jnp.float32)
    weight, bias = init_fc_params(k_p, D, OUT)

    # One-time transpose at parameter-setup time (not inside the forward path).
    weight_t = jnp.asarray(weight.T)           # (D, N)

    # Plain JAX reference (PyTorch layout: x @ W^T + b).
    y_ref = x @ weight.T + bias

    # 1) Pallas f32 path (small_m_threshold=0 forces the kernel so it runs here).
    y = linear_pallas(x, weight_t, bias, small_m_threshold=0)
    jax.block_until_ready(y)
    assert y.shape == (B, S, OUT)
    assert jnp.allclose(y, y_ref, atol=1e-5, rtol=1e-5)

    # 2) Pallas bf16-traffic path (halves HBM bytes; f32 accumulation; looser tol).
    y_bf = linear_pallas(x, weight_t, bias, small_m_threshold=0,
                         compute_dtype=jnp.bfloat16)
    jax.block_until_ready(y_bf)
    assert y_bf.shape == (B, S, OUT)
    assert jnp.allclose(y_bf, y_ref, atol=3e-2, rtol=3e-2)

    # 3) Default small-M fast path (M=16 -> plain XLA dot, no kernel overhead).
    y_fast = linear_pallas(x, weight_t, bias)
    jax.block_until_ready(y_fast)
    assert jnp.allclose(y_fast, y_ref, atol=1e-5, rtol=1e-5)

    print("KERNEL_OK")
</pallas_src>

<mosaic_0001>
module attributes {stable_mosaic.version = 11 : i64} {
  func.func @_linear_kernel(%arg0: i32, %arg1: memref<8x32xf32, #tpu.memory_space<vmem>>, %arg2: memref<32x256xf32, #tpu.memory_space<vmem>>, %arg3: memref<1x256xf32, #tpu.memory_space<vmem>>, %arg4: memref<8x256xf32, #tpu.memory_space<vmem>>) attributes {dimension_semantics = [#tpu.dimension_semantics<parallel>], iteration_bounds = array<i64: 2>, scalar_prefetch = 0 : i64, scratch_operands = 0 : i64, tpu.core_type = #tpu.core_type<tc>, window_params = [{transform_indices = @transform_0, window_bounds = array<i64: 8, 32>}, {pipeline_mode = #tpu.pipeline_mode<synchronous>, transform_indices = @transform_1, window_bounds = array<i64: 32, 256>}, {pipeline_mode = #tpu.pipeline_mode<synchronous>, transform_indices = @transform_2, window_bounds = array<i64: 1, 256>}, {transform_indices = @transform_3, window_bounds = array<i64: 8, 256>}]} {
    %c0 = arith.constant 0 : index
    %c0_0 = arith.constant 0 : index
    %0 = vector.load %arg1[%c0, %c0_0] : memref<8x32xf32, #tpu.memory_space<vmem>>, vector<8x32xf32>
    %c0_1 = arith.constant 0 : index
    %c0_2 = arith.constant 0 : index
    %1 = vector.load %arg2[%c0_1, %c0_2] : memref<32x256xf32, #tpu.memory_space<vmem>>, vector<32x256xf32>
    %cst = arith.constant dense<0.000000e+00> : vector<8x256xf32>
    %2 = tpu.matmul %0, %1, %cst {dimension_numbers = #tpu.dot_dimension_numbers<[1], [0], [0], [1], [0, 0, 1, 1], [], []>} : vector<8x32xf32>, vector<32x256xf32>, vector<8x256xf32> -> vector<8x256xf32>
    %c0_3 = arith.constant 0 : index
    %c0_4 = arith.constant 0 : index
    %3 = vector.load %arg3[%c0_3, %c0_4] : memref<1x256xf32, #tpu.memory_space<vmem>>, vector<1x256xf32>
    %4 = vector.broadcast %3 : vector<1x256xf32> to vector<8x256xf32>
    %5 = arith.addf %2, %4 : vector<8x256xf32>
    %c0_5 = arith.constant 0 : index
    %c0_6 = arith.constant 0 : index
    %6 = vector.load %arg4[%c0_5, %c0_6] : memref<8x256xf32, #tpu.memory_space<vmem>>, vector<8x256xf32>
    tpu.vector_store %arg4[%c0_5, %c0_6], %5 {strides = array<i32>} : memref<8x256xf32, #tpu.memory_space<vmem>>, vector<8x256xf32>,
    return
  }
  func.func @transform_0(%arg0: i32) -> (i32, i32) {
    %c0_i32 = arith.constant 0 : i32
    %c0_i32_0 = arith.constant 0 : i32
    return %arg0, %c0_i32 : i32, i32
  }
  func.func @transform_1(%arg0: i32) -> (i32, i32) {
    %c0_i32 = arith.constant 0 : i32
    %c0_i32_0 = arith.constant 0 : i32
    %c0_i32_1 = arith.constant 0 : i32
    return %c0_i32, %c0_i32_0 : i32, i32
  }
  func.func @transform_2(%arg0: i32) -> (i32, i32) {
    %c0_i32 = arith.constant 0 : i32
    %c0_i32_0 = arith.constant 0 : i32
    %c0_i32_1 = arith.constant 0 : i32
    return %c0_i32, %c0_i32_0 : i32, i32
  }
  func.func @transform_3(%arg0: i32) -> (i32, i32) {
    %c0_i32 = arith.constant 0 : i32
    %c0_i32_0 = arith.constant 0 : i32
    return %arg0, %c0_i32 : i32, i32
  }
}

</mosaic_0001>

<llo_original>
// kernel: tpu_custom_call.1
$region0: #{tpu_custom_call.1}
  #allocation0 [shape = 'u32[]', space=smem, size = 0x4, offset = 0x4, fixed_abs, tag = 'smem constant byte address 0x4 - core index']
  #allocation1 [shape = 'u32[144,128]{1,0:T(1,128)}', space=vmem, size = 0x12000, scoped, tag = 'internal scratch']
  %s0 = inlined_call_operand.hbm [shape: f32[16,32], index: 0, kind: input, shape index: {}]
  %s1 = inlined_call_operand.hbm [shape: f32[32,256], index: 1, kind: input, shape index: {}]
  %s2 = inlined_call_operand.vmem [shape: f32[1,256], index: 2, kind: input, shape index: {}]
  %s3 = inlined_call_operand.hbm [shape: f32[16,256], index: 3, kind: output, shape index: {}]
  %s4 = sld [smem:[#allocation0]]
  $region53: #{tpu_custom_call.1} parent=0
    _
  %s6 = ssub.s32 1, %s4
  %s7 = scalar_select 0, %s6, %s4
  $region1: #{tpu_custom_call.1} parent=0
    #allocation2 [shape = 'u8[8192]{0}', space=vmem, size = 0x2000, scoped, tag = 'input window, operand 0']
    #allocation3 [shape = 's32[2]{0}', space=sflag, size = 0x8, scoped, tag = 'scoped memory for tpu_custom_call.1']
    #allocation4 [shape = 's32[2]{0}', space=sflag, size = 0x8, scoped, tag = 'scoped memory for tpu_custom_call.1']
    #allocation5 [shape = 'u8[32768]{0}', space=vmem, size = 0x8000, scoped, tag = 'input window, operand 1, single buffered']
    #allocation6 [shape = 's32[1]{0}', space=sflag, size = 0x4, scoped, tag = 'scoped memory for tpu_custom_call.1']
    #allocation7 [shape = 'u8[16384]{0}', space=vmem, size = 0x4000, scoped, tag = 'output window, operand 0']
    %8 = vsyncpa [#allocation3], 0
    %s9 = scalar_lea.sflag [#allocation3], 1
    %10 = vsyncpa %s9, 0
    %11 = vsyncpa [#allocation6], 0
    %12 = vsyncpa [#allocation4], 0
    %s13 = scalar_lea.sflag [#allocation4], 1
    %14 = vsyncpa %s13, 0
    loop: start=0, step=1, limit=4
    $region2: #{tpu_custom_call.1} parent=1 // loop_pre_header
      _
    $region3: #{tpu_custom_call.1} parent=1 // loop_header
      %s16 = sphi 0, %s20
      %p17 = scmp.ge.s32.totalorder %s16, 4
      %s26 = sphi 0, %s28
      %s29 = sphi 0, %s26
      %s30 = sphi 0, %s29
      %s46 = sphi 0, %s30
      %s50 = sphi 0, %s50
      %s52 = sphi 0, %s50
      %s53 = sphi 0, %s52
      %s67 = sphi 0, %s53
      %s71 = sphi 0, %s71
      %s73 = sphi 0, %s71
      %s74 = sphi 0, %s73
      %s88 = sphi 0, %s74
      %s94 = sphi 0, %s96
      %s97 = sphi 0, %s94
      %s98 = sphi 0, %s97
      %s114 = sphi 0, %s98
    $region4: #{tpu_custom_call.1} parent=1 // loop_header_branch
      %19 = sbr.rel (%p17) target = $region8
    $region5: #{tpu_custom_call.1} parent=1 // loop_body
      %s21 = ssub.s32 %s16, 1
      %s22 = ssub.s32 %s16, 2
      %s23 = sadd.s32 %s16, 1
      %s24 = ssub.s32 %s16, %s23
      %p25 = scmp.eq.s32.totalorder %s24, 0
      %s27 = sadd.s32 %s26, 1
      %s28 = scalar_select %p25, %s26, %s27
      %p31 = pneg %p25
      %p32 = scmp.eq.s32.totalorder %s16, 1
      %p33 = por %p31, %p32
      %p34 = scmp.ne.s32.totalorder %s26, %s29
      %p35 = scmp.eq.s32.totalorder %s16, 0
      %p36 = por %p34, %p35
      %p37 = scmp.ne.s32.totalorder %s26, %s29
      %p38 = scmp.eq.s32.totalorder %s21, 1
      %p39 = por %p37, %p38
      %p40 = scmp.ne.s32.totalorder %s29, %s30
      %p41 = scmp.eq.s32.totalorder %s21, 0
      %p42 = por %p40, %p41
      %p43 = scmp.ne.s32.totalorder %s29, %s30
      %p44 = scmp.eq.s32.totalorder %s22, 1
      %p45 = por %p43, %p44
      %p47 = scmp.ne.s32.totalorder %s30, %s46
      %p48 = scmp.eq.s32.totalorder %s22, 0
      %p49 = por %p47, %p48
      %s51 = sadd.s32 %s50, 1
      %p54 = scmp.eq.s32.totalorder %s16, 1
      %p55 = scmp.ne.s32.totalorder %s50, %s52
      %p56 = scmp.eq.s32.totalorder %s16, 0
      %p57 = por %p55, %p56
      %p58 = scmp.ne.s32.totalorder %s50, %s52
      %p59 = scmp.eq.s32.totalorder %s21, 1
      %p60 = por %p58, %p59
      %p61 = scmp.ne.s32.totalorder %s52, %s53
      %p62 = scmp.eq.s32.totalorder %s21, 0
      %p63 = por %p61, %p62
      %p64 = scmp.ne.s32.totalorder %s52, %s53
      %p65 = scmp.eq.s32.totalorder %s22, 1
      %p66 = por %p64, %p65
      %p68 = scmp.ne.s32.totalorder %s53, %s67
      %p69 = scmp.eq.s32.totalorder %s22, 0
      %p70 = por %p68, %p69
      %s72 = sadd.s32 %s71, 1
      %p75 = scmp.eq.s32.totalorder %s16, 1
      %p76 = scmp.ne.s32.totalorder %s71, %s73
      %p77 = scmp.eq.s32.totalorder %s16, 0
      %p78 = por %p76, %p77
      %p79 = scmp.ne.s32.totalorder %s71, %s73
      %p80 = scmp.eq.s32.totalorder %s21, 1
      %p81 = por %p79, %p80
      %p82 = scmp.ne.s32.totalorder %s73, %s74
      %p83 = scmp.eq.s32.totalorder %s21, 0
      %p84 = por %p82, %p83
      %p85 = scmp.ne.s32.totalorder %s73, %s74
      %p86 = scmp.eq.s32.totalorder %s22, 1
      %p87 = por %p85, %p86
      %p89 = scmp.ne.s32.totalorder %s74, %s88
      %p90 = scmp.eq.s32.totalorder %s22, 0
      %p91 = por %p89, %p90
      %s92 = ssub.s32 %s16, %s23
      %p93 = scmp.eq.s32.totalorder %s92, 0
      %s95 = sadd.s32 %s94, 1
      %s96 = scalar_select %p93, %s94, %s95
      %p99 = pneg %p93
      %p100 = scmp.eq.s32.totalorder %s16, 1
      %p101 = por %p99, %p100
      %p102 = scmp.ne.s32.totalorder %s94, %s97
      %p103 = scmp.eq.s32.totalorder %s16, 0
      %p104 = por %p102, %p103
      %p105 = scmp.ne.s32.totalorder %s94, %s97
      %p106 = scmp.eq.s32.totalorder %s21, 1
      %p107 = por %p105, %p106
      %p108 = scmp.ne.s32.totalorder %s97, %s98
      %p109 = scmp.eq.s32.totalorder %s21, 0
      %p110 = por %p108, %p109
      %p111 = scmp.ne.s32.totalorder %s97, %s98
      %p112 = scmp.eq.s32.totalorder %s22, 1
      %p113 = por %p111, %p112
      %p115 = scmp.ne.s32.totalorder %s98, %s114
      %p116 = scmp.eq.s32.totalorder %s22, 0
      %p117 = por %p115, %p116
      %p118 = scmp.le.s32.totalorder 1, %s16
      %p119 = scmp.lt.s32.totalorder %s16, 3
      %p120 = pnand %p118, %p119
      %p121 = pneg %p120
      // Predicated region
      $region9: #{tpu_custom_call.1} parent=5 // pred_check
        _
      $region10: #{tpu_custom_call.1} parent=5 // pred_check_branch
        %123 = sbr.rel (%p120) target = $region12
      $region11: #{tpu_custom_call.1} parent=5 // pred_region
        %s124 = ssub.s32 %s16, 1
        // Predicated region
        $region13: #{tpu_custom_call.1} parent=11 // pred_check
          %p125 = pneg %p63
        $region14: #{tpu_custom_call.1} parent=11 // pred_check_branch
          %127 = sbr.rel (%p125) target = $region16
        $region15: #{tpu_custom_call.1} parent=11 // pred_region
          %s129 = ssub.s32 1024, 1024
          %130 = vsyncadd [#allocation6], %s129
          %s131 = sshll.u32 [#allocation5], 4
          %s132 = int_to_ptr.vmem [resolvable:$true] %s131
          %137 = dma.hbm_to_vmem [thread:$0]  %s1, 1024, %s132, [#allocation6], 256, 256, 16
        $region16: #{tpu_custom_call.1} parent=11 // pred_fallthru
          _
        // Predicated region
        $region17: #{tpu_custom_call.1} parent=11 // pred_check
          %p138 = pneg %p84
        $region18: #{tpu_custom_call.1} parent=11 // pred_check_branch
          %140 = sbr.rel (%p138) target = $region20
        $region19: #{tpu_custom_call.1} parent=11 // pred_region
          _
        $region20: #{tpu_custom_call.1} parent=11 // pred_fallthru
          _
      $region12: #{tpu_custom_call.1} parent=5 // pred_fallthru
        _
      %p141 = scmp.lt.s32.totalorder %s16, 2
      // Predicated region
      $region21: #{tpu_custom_call.1} parent=5 // pred_check
        %p142 = pneg %p141
      $region22: #{tpu_custom_call.1} parent=5 // pred_check_branch
        %144 = sbr.rel (%p142) target = $region24
      $region23: #{tpu_custom_call.1} parent=5 // pred_region
        // Predicated region
        $region25: #{tpu_custom_call.1} parent=23 // pred_check
          %p145 = pneg %p36
        $region26: #{tpu_custom_call.1} parent=23 // pred_check_branch
          %147 = sbr.rel (%p145) target = $region28
        $region27: #{tpu_custom_call.1} parent=23 // pred_region
          %s148 = sand.u32 %s26, 1
          %s149 = scalar_lea.sflag [#allocation3], %s148
          %s150 = sand.u32 %s26, 1
          %s151 = smul.addr %s150, 8
          %s152 = scalar_lea.vmem [#allocation2], %s151
          %s154 = ssub.s32 128, 128
          %155 = vsyncadd %s149, %s154
          %s156 = smul.addr %s16, 128
          %s157 = scalar_lea.hbm %s0, %s156
          %s159 = sshll.u32 %s152, 4
          %s160 = int_to_ptr.vmem [resolvable:$true] %s159
          %162 = dma.hbm_to_vmem [thread:$0]  %s157, 128, %s160, %s149
        $region28: #{tpu_custom_call.1} parent=23 // pred_fallthru
          _
      $region24: #{tpu_custom_call.1} parent=5 // pred_fallthru
        _
      %p163 = scmp.le.s32.totalorder 1, %s16
      %p164 = scmp.lt.s32.totalorder %s16, 3
      %p165 = pnand %p163, %p164
      %p166 = pneg %p165
      // Predicated region
      $region29: #{tpu_custom_call.1} parent=5 // pred_check
        _
      $region30: #{tpu_custom_call.1} parent=5 // pred_check_branch
        %168 = sbr.rel (%p165) target = $region32
      $region31: #{tpu_custom_call.1} parent=5 // pred_region
        %s169 = ssub.s32 %s16, 1
        %s170 = sand.u32 %s29, 1
        %s171 = scalar_lea.sflag [#allocation3], %s170
        %s172 = sand.u32 %s29, 1
        %s173 = smul.addr %s172, 8
        %s174 = scalar_lea.vmem [#allocation2], %s173
        // Predicated region
        $region33: #{tpu_custom_call.1} parent=31 // pred_check
          %p175 = pneg %p42
        $region34: #{tpu_custom_call.1} parent=31 // pred_check_branch
          %177 = sbr.rel (%p175) target = $region36
        $region35: #{tpu_custom_call.1} parent=31 // pred_region
          %178 = dma.done %s171, 128
        $region36: #{tpu_custom_call.1} parent=31 // pred_fallthru
          _
        // Predicated region
        $region37: #{tpu_custom_call.1} parent=31 // pred_check
          %p179 = pneg %p63
        $region38: #{tpu_custom_call.1} parent=31 // pred_check_branch
          %181 = sbr.rel (%p179) target = $region40
        $region39: #{tpu_custom_call.1} parent=31 // pred_region
          %182 = dma.done [#allocation6], 1024
        $region40: #{tpu_custom_call.1} parent=31 // pred_fallthru
          _
        %s183 = sand.u32 %s29, 1
        %s184 = scalar_lea.sflag [#allocation3], %s183
        %s185 = sand.u32 %s29, 1
        %s186 = smul.addr %s185, 8
        %s187 = scalar_lea.vmem [#allocation2], %s186
        %p188 = pneg %p42
        %p189 = pneg %p39
        %p190 = pneg %p63
        %p191 = pneg %p60
        %p192 = pneg %p84
        %p193 = pneg %p81
        %p194 = pneg %p110
        %p195 = pneg %p107
        %s196 = sand.u32 %s97, 1
        %s197 = scalar_lea.sflag [#allocation4], %s196
        %s198 = sand.u32 %s97, 1
        %s199 = smul.addr %s198, 16
        %s200 = scalar_lea.vmem [#allocation7], %s199
        %v201 = vld [vmem:[%s174] sm:$0xff]
        %v202 = vld [vmem:[#allocation5] sm:$0xff]
        %v203 = vld [vmem:[#allocation5 + $0x8] sm:$0xff]
        %v204 = vld [vmem:[#allocation5 + $0x10] sm:$0xff]
        %v205 = vld [vmem:[#allocation5 + $0x18] sm:$0xff]
        %v206 = vld [vmem:[#allocation5 + $0x20] sm:$0xff]
        %v207 = vld [vmem:[#allocation5 + $0x28] sm:$0xff]
        %v208 = vld [vmem:[#allocation5 + $0x30] sm:$0xff]
        %v209 = vld [vmem:[#allocation5 + $0x38] sm:$0xff]
        %v210 = vld [vmem:[%s2] sm:$0x3]
        %v212 = vlaneseq
        %v213 = vshrl.u32 %v212, 7
        %v214 = vsub.s32 0, %v213
        %v215 = vrot.slane %v210, %v214
        %v216 = vlaneseq
        %v217 = vshrl.u32 %v216, 7
        %v218 = vsub.s32 1, %v217
        %v219 = vrot.slane %v210, %v218
        %vm222 = vcmask 261120
        %v224 = vsel %vm222, %v201, 0
        %226 = vmatprep.subr.mxu0 %v203
        %227 = vmatpush1.msra.mxu0 %v202
        %228 = vmatprep.subr.mxu0 %v205
        %229 = vmatpush1.msra.mxu0 %v204
        %230 = vmatprep.subr.mxu0 %v207
        %231 = vmatpush1.msra.mxu0 %v206
        %232 = vmatprep.subr.mxu0 %v209
        %233 = vmatpush1.msra.mxu0 %v208
        %234 = vmatprep.subr.mxu0 0.0
        %235 = vmatpush1.msra.mxu0 0.0
        %236 = vmatprep.subr.mxu0 0.0
        %237 = vmatpush1.msra.mxu0 0.0
        %238 = vmatprep.subr.mxu0 0.0
        %239 = vmatpush1.msra.mxu0 0.0
        %240 = vmatprep.subr.mxu0 0.0
        %241 = vmatpush1.msra.mxu0 0.0
        %242 = vmatprep.subr.mxu0 0.0
        %243 = vmatpush1.msra.mxu0 0.0
        %244 = vmatprep.subr.mxu0 0.0
        %245 = vmatpush1.msra.mxu0 0.0
        %246 = vmatprep.subr.mxu0 0.0
        %247 = vmatpush1.msra.mxu0 0.0
        %248 = vmatprep.subr.mxu0 0.0
        %249 = vmatpush1.msra.mxu0 0.0
        %250 = vmatprep.subr.mxu0 0.0
        %251 = vmatpush1.msra.mxu0 0.0
        %252 = vmatprep.subr.mxu0 0.0
        %253 = vmatpush1.msra.mxu0 0.0
        %254 = vmatprep.subr.mxu0 0.0
        %255 = vmatpush1.msra.mxu0 0.0
        %256 = vmatprep.subr.mxu0 0.0
        %257 = vmatpush1.msra.mxu0 0.0
        %258 = vmatprep.subr.mxu0 0.0
        %259 = vmatpush1.msra.mxu0 0.0
        %260 = vmatprep.subr.mxu0 0.0
        %261 = vmatpush1.msra.mxu0 0.0
        %262 = vmatprep.subr.mxu0 0.0
        %263 = vmatpush1.msra.mxu0 0.0
        %264 = vmatprep.subr.mxu0 0.0
        %265 = vmatpush1.msra.mxu0 0.0
        %266 = vmatprep.subr.mxu0 0.0
        %267 = vmatpush1.msra.mxu0 0.0
        %268 = vmatprep.subr.mxu0 0.0
        %269 = vmatpush1.msra.mxu0 0.0
        %270 = vmatprep.subr.mxu0 0.0
        %271 = vmatpush1.msra.mxu0 0.0
        %272 = vmatprep.subr.mxu0 0.0
        %273 = vmatpush1.msra.mxu0 0.0
        %274 = vmatprep.subr.mxu0 0.0
        %275 = vmatpush1.msra.mxu0 0.0
        %276 = vmatprep.subr.mxu0 0.0
        %277 = vmatpush1.msra.mxu0 0.0
        %278 = vmatprep.subr.mxu0 0.0
        %279 = vmatpush1.msra.mxu0 0.0
        %280 = vmatprep.subr.mxu0 0.0
        %281 = vmatpush1.msra.mxu0 0.0
        %282 = vmatprep.subr.mxu0 0.0
        %283 = vmatpush1.msra.mxu0 0.0
        %284 = vmatprep.subr.mxu0 0.0
        %285 = vmatpush1.msra.mxu0 0.0
        %286 = vmatprep.subr.mxu0 0.0
        %287 = vmatpush1.msra.mxu0 0.0
        %288 = vmatprep.subr.mxu0 0.0
        %289 = vmatpush1.msra.mxu0 0.0
        %290 = vmatprep.mubr.f32.mxu0 0.0
        %291 = vmatmul.mubr.f32.gmra.mrb[0].mxu0 %v224
        %v292 = vpop.f32.mrb[0].mxu0
        %v293 = vadd.f32 %v215, %v292
        %v294 = vpop.f32.mrb[0].mxu0
        %v295 = vadd.f32 %v219, %v294
        %296 = vdwg.mxu0
        %297 = vst [vmem:[%s200] sm:$0xff] %v293
        %298 = vst [vmem:[%s200 + $0x8] sm:$0xff] %v295
        %s299 = sand.u32 %s97, 1
        %s300 = scalar_lea.sflag [#allocation4], %s299
        %s301 = sand.u32 %s97, 1
        %s302 = smul.addr %s301, 16
        %s303 = scalar_lea.vmem [#allocation7], %s302
        // Predicated region
        $region41: #{tpu_custom_call.1} parent=31 // pred_check
          %p304 = pneg %p107
        $region42: #{tpu_custom_call.1} parent=31 // pred_check_branch
          %306 = sbr.rel (%p304) target = $region44
        $region43: #{tpu_custom_call.1} parent=31 // pred_region
          %s308 = ssub.s32 256, 256
          %309 = vsyncadd %s300, %s308
          %s310 = smul.addr %s21, 2
          %s311 = smul.addr %s310, 128
          %s312 = scalar_lea.hbm %s3, %s311
          %s314 = sshll.u32 %s303, 4
          %s315 = int_to_ptr.vmem [resolvable:$true] %s314
          %317 = dma.vmem_to_hbm [thread:$0]  %s315, 256, %s312, %s300
        $region44: #{tpu_custom_call.1} parent=31 // pred_fallthru
          _
      $region32: #{tpu_custom_call.1} parent=5 // pred_fallthru
        _
      %p318 = scmp.le.s32.totalorder 2, %s16
      // Predicated region
      $region45: #{tpu_custom_call.1} parent=5 // pred_check
        %p319 = pneg %p318
      $region46: #{tpu_custom_call.1} parent=5 // pred_check_branch
        %321 = sbr.rel (%p319) target = $region48
      $region47: #{tpu_custom_call.1} parent=5 // pred_region
        %s322 = ssub.s32 %s16, 2
        // Predicated region
        $region49: #{tpu_custom_call.1} parent=47 // pred_check
          %p323 = pneg %p113
        $region50: #{tpu_custom_call.1} parent=47 // pred_check_branch
          %325 = sbr.rel (%p323) target = $region52
        $region51: #{tpu_custom_call.1} parent=47 // pred_region
          %s326 = sand.u32 %s98, 1
          %s327 = scalar_lea.sflag [#allocation4], %s326
          %s328 = sand.u32 %s98, 1
          %s329 = smul.addr %s328, 16
          %s330 = scalar_lea.vmem [#allocation7], %s329
          %331 = dma.done %s327, 256
        $region52: #{tpu_custom_call.1} parent=47 // pred_fallthru
          _
      $region48: #{tpu_custom_call.1} parent=5 // pred_fallthru
        _
    $region6: #{tpu_custom_call.1} parent=1 // loop_footer
      %s20 = sadd.s32 1, %s16
    $region7: #{tpu_custom_call.1} parent=1 // loop_footer_branch
      %15 = sbr.rel target = $region3
    $region8: #{tpu_custom_call.1} parent=1 // loop_exit
      _
    %332 = vsyncpa [#allocation3], 1
    %s333 = scalar_lea.sflag [#allocation3], 1
    %334 = vsyncpa %s333, 1
    %335 = vsyncpa [#allocation6], 1
    %336 = vsyncpa [#allocation4], 1
    %s337 = scalar_lea.sflag [#allocation4], 1
    %338 = vsyncpa %s337, 1

</llo_original>
